<compile_context>
chip_gen: v6e
topology: v6e:2x2x1
jax: 0.10.0
libtpu: 0.0.40
codegen_flags: <defaults>
</compile_context>

<pallas_src>
import jax
import jax.numpy as jnp
from jax.experimental import pallas as pl
from jax.experimental.pallas import tpu as pltpu


def _round_up(a, b):
    return ((a + b - 1) // b) * b


def _cluster_assign_kernel(x_ref, ct_ref, csq_ref, o_ref):
    # x_ref:   (TN, D)  native dtype, pipelined over rows
    # ct_ref:  (D,  K)  native dtype, pre-transposed centers (grid-resident)
    # csq_ref: (1,  K)  f32, precomputed ||c||^2 (grid-resident)
    # o_ref:   (TN, K)  f32 probabilities
    x = x_ref[...]

    xf = x.astype(jnp.float32)
    x_sq = jnp.sum(xf * xf, axis=1, keepdims=True)                       # (TN, 1)

    # x . c^T on the MXU (centers already transposed to (D, K)), f32 accumulate.
    cross = jnp.dot(x, ct_ref[...], preferred_element_type=jnp.float32)  # (TN, K)

    d2 = x_sq + csq_ref[...] - 2.0 * cross
    d2 = jnp.maximum(d2, 0.0)                                            # numerical clamp
    dist = jnp.sqrt(d2)                                                  # torch.cdist (p=2)

    # softmin over dim=1 == softmax(-dist), numerically stable, exact division
    # (one scalar per row -> division cost is negligible, rows sum to 1).
    neg = -dist
    m = jnp.max(neg, axis=1, keepdims=True)                              # (TN, 1)
    e = jnp.exp(neg - m)                                                 # (TN, K)
    denom = jnp.sum(e, axis=1, keepdims=True)                            # (TN, 1)
    o_ref[...] = (e / denom).astype(o_ref.dtype)


def cluster_assignment_forward(x, cluster_centers, n_clusters):
    """JAX/Pallas equivalent of ClusterAssignment.forward."""
    if cluster_centers is None:
        # Trivial branch (matches torch.zeros(len(input), n_clusters)).
        return jnp.zeros((x.shape[0], n_clusters), dtype=jnp.float32)

    N, D = x.shape
    K = cluster_centers.shape[0]
    out_dtype = jnp.promote_types(x.dtype, jnp.float32)   # probabilities in >= f32

    # One-time, tiny wrapper-side work: transpose centers to (D, K) so the
    # resident RHS is MXU-friendly, and precompute ||c||^2 in f32.
    ct = cluster_centers.astype(x.dtype).T                               # (D, K)
    c_sq = jnp.sum(ct.astype(jnp.float32) ** 2, axis=0, keepdims=True)   # (1, K)

    x_itemsize = jnp.dtype(x.dtype).itemsize
    out_itemsize = jnp.dtype(out_dtype).itemsize

    # --- Tile sizing against the full VMEM footprint ----------------------
    #   2 x (TN, D)  x tile   (double-buffered)
    #   2 x (TN, K)  out tile (double-buffered)
    #   1 x (D,  K)  centers + (1, K) csq (single-buffered, grid-resident)
    per_row = 2 * D * x_itemsize + 2 * K * out_itemsize
    resident = D * K * x_itemsize + K * 4
    budget = 16 * 1024 * 1024            # fits v5e's default scoped VMEM w/ headroom
    tn = max(8, (budget - resident) // max(per_row, 1))
    tn = max(512, min(4096, tn))         # pipeline efficiency drops sharply below ~512 rows

    n8 = _round_up(N, 8)
    if n8 >= 1024:
        # Guarantee >= 2 row tiles so dimension_semantics=("parallel",) can
        # actually shard across both TensorCores on v7x.
        tn = min(tn, _round_up(pl.cdiv(n8, 2), 8))
    tn = min(tn, n8)
    TN = max(8, (tn // 8) * 8)

    grid = (pl.cdiv(N, TN),)

    vmem_bytes = 2 * TN * D * x_itemsize + 2 * TN * K * out_itemsize + resident
    vmem_limit = int(min(64 * 1024 * 1024, max(vmem_bytes + (8 << 20), 16 << 20)))

    out = pl.pallas_call(
        _cluster_assign_kernel,
        out_shape=jax.ShapeDtypeStruct((N, K), out_dtype),
        grid_spec=pltpu.PrefetchScalarGridSpec(
            num_scalar_prefetch=0,
            grid=grid,
            in_specs=[
                # x tile, pipelined over rows; last dim = full D (no padding needed).
                pl.BlockSpec((TN, D), lambda i: (i, 0)),
                # resident centers (D, K) / ||c||^2 (1, K): constant block index,
                # single-buffered.
                pl.BlockSpec((D, K), lambda i: (0, 0), pipeline_mode=pl.Buffered(1)),
                pl.BlockSpec((1, K), lambda i: (0, 0), pipeline_mode=pl.Buffered(1)),
            ],
            out_specs=pl.BlockSpec((TN, K), lambda i: (i, 0)),
        ),
        compiler_params=pltpu.CompilerParams(
            dimension_semantics=("parallel",),   # shards row tiles across TCs (v7x)
            vmem_limit_bytes=vmem_limit,
        ),
    )(x, ct, c_sq)

    return out


def _reference(x, centers):
    # pure-JAX reference for correctness check
    diff = x[:, None, :].astype(jnp.float32) - centers[None, :, :].astype(jnp.float32)
    dist = jnp.sqrt(jnp.sum(diff * diff, axis=-1))
    return jax.nn.softmax(-dist, axis=1)


if __name__ == "__main__":
    key = jax.random.PRNGKey(0)
    k_x, k_c = jax.random.split(key)

    N, D, K = 16, 32, 8          # samples, feature dim, n_clusters
    x = jax.random.normal(k_x, (N, D), dtype=jnp.float32)
    # deterministic synthetic cluster centers (module would normally learn these)
    centers = jax.random.normal(k_c, (K, D), dtype=jnp.float32)

    # cluster_centers is None branch (returns zeros, plain JAX glue)
    zeros_out = cluster_assignment_forward(x, None, K)
    jax.block_until_ready(zeros_out)
    assert zeros_out.shape == (N, K) and float(jnp.abs(zeros_out).sum()) == 0.0

    # main path: Pallas kernel
    out = cluster_assignment_forward(x, centers, K)
    jax.block_until_ready(out)

    ref = _reference(x, centers)
    assert out.shape == (N, K)
    assert jnp.allclose(out, ref, atol=1e-4, rtol=1e-4), float(jnp.max(jnp.abs(out - ref)))
    # rows of a softmin sum to 1 (exact division in the kernel)
    assert jnp.allclose(jnp.sum(out, axis=1), jnp.ones((N,)), atol=1e-4)

    print("KERNEL_OK")
</pallas_src>

<mosaic_0001>
module attributes {stable_mosaic.version = 11 : i64} {
  func.func @_cluster_assign_kernel(%arg0: i32, %arg1: memref<16x32xf32, #tpu.memory_space<vmem>>, %arg2: memref<32x8xf32, #tpu.memory_space<vmem>>, %arg3: memref<1x8xf32, #tpu.memory_space<vmem>>, %arg4: memref<16x8xf32, #tpu.memory_space<vmem>>) attributes {dimension_semantics = [#tpu.dimension_semantics<parallel>], iteration_bounds = array<i64: 1>, scalar_prefetch = 0 : i64, scratch_operands = 0 : i64, tpu.core_type = #tpu.core_type<tc>, window_params = [{transform_indices = @transform_0, window_bounds = array<i64: 16, 32>}, {pipeline_mode = #tpu.pipeline_mode<synchronous>, transform_indices = @transform_1, window_bounds = array<i64: 32, 8>}, {pipeline_mode = #tpu.pipeline_mode<synchronous>, transform_indices = @transform_2, window_bounds = array<i64: 1, 8>}, {transform_indices = @transform_3, window_bounds = array<i64: 16, 8>}]} {
    %c0 = arith.constant 0 : index
    %c0_0 = arith.constant 0 : index
    %0 = vector.load %arg1[%c0, %c0_0] : memref<16x32xf32, #tpu.memory_space<vmem>>, vector<16x32xf32>
    %1 = arith.mulf %0, %0 : vector<16x32xf32>
    %cst = arith.constant dense<0.000000e+00> : vector<16xf32>
    %2 = vector.multi_reduction <add>, %1, %cst [1] : vector<16x32xf32> to vector<16xf32>
    %3 = vector.shape_cast %2 : vector<16xf32> to vector<16x1xf32>
    %c0_1 = arith.constant 0 : index
    %c0_2 = arith.constant 0 : index
    %4 = vector.load %arg2[%c0_1, %c0_2] : memref<32x8xf32, #tpu.memory_space<vmem>>, vector<32x8xf32>
    %cst_3 = arith.constant dense<0.000000e+00> : vector<16x8xf32>
    %5 = tpu.matmul %0, %4, %cst_3 {dimension_numbers = #tpu.dot_dimension_numbers<[1], [0], [0], [1], [0, 0, 1, 1], [], []>} : vector<16x32xf32>, vector<32x8xf32>, vector<16x8xf32> -> vector<16x8xf32>
    %c0_4 = arith.constant 0 : index
    %c0_5 = arith.constant 0 : index
    %6 = vector.load %arg3[%c0_4, %c0_5] : memref<1x8xf32, #tpu.memory_space<vmem>>, vector<1x8xf32>
    %7 = vector.broadcast %3 : vector<16x1xf32> to vector<16x8xf32>
    %8 = vector.broadcast %6 : vector<1x8xf32> to vector<16x8xf32>
    %9 = arith.addf %7, %8 : vector<16x8xf32>
    %cst_6 = arith.constant 2.000000e+00 : f32
    %10 = vector.broadcast %cst_6 : f32 to vector<16x8xf32>
    %11 = arith.mulf %10, %5 : vector<16x8xf32>
    %12 = arith.subf %9, %11 : vector<16x8xf32>
    %cst_7 = arith.constant 0.000000e+00 : f32
    %13 = vector.broadcast %cst_7 : f32 to vector<16x8xf32>
    %14 = arith.maximumf %12, %13 : vector<16x8xf32>
    %15 = math.sqrt %14 : vector<16x8xf32>
    %cst_8 = arith.constant 0.000000e+00 : f32
    %16 = vector.broadcast %cst_8 : f32 to vector<16x8xf32>
    %17 = arith.subf %16, %15 : vector<16x8xf32>
    %cst_9 = arith.constant dense<0xFF800000> : vector<16xf32>
    %18 = vector.multi_reduction <maximumf>, %17, %cst_9 [1] : vector<16x8xf32> to vector<16xf32>
    %19 = vector.shape_cast %18 : vector<16xf32> to vector<16x1xf32>
    %20 = vector.broadcast %19 : vector<16x1xf32> to vector<16x8xf32>
    %21 = arith.subf %17, %20 : vector<16x8xf32>
    %22 = math.exp %21 : vector<16x8xf32>
    %cst_10 = arith.constant dense<0.000000e+00> : vector<16xf32>
    %23 = vector.multi_reduction <add>, %22, %cst_10 [1] : vector<16x8xf32> to vector<16xf32>
    %24 = vector.shape_cast %23 : vector<16xf32> to vector<16x1xf32>
    %25 = vector.broadcast %24 : vector<16x1xf32> to vector<16x8xf32>
    %26 = arith.divf %22, %25 : vector<16x8xf32>
    %c0_11 = arith.constant 0 : index
    %c0_12 = arith.constant 0 : index
    %27 = vector.load %arg4[%c0_11, %c0_12] : memref<16x8xf32, #tpu.memory_space<vmem>>, vector<16x8xf32>
    tpu.vector_store %arg4[%c0_11, %c0_12], %26 {strides = array<i32>} : memref<16x8xf32, #tpu.memory_space<vmem>>, vector<16x8xf32>,
    return
  }
  func.func @transform_0(%arg0: i32) -> (i32, i32) {
    %c0_i32 = arith.constant 0 : i32
    %c0_i32_0 = arith.constant 0 : i32
    return %arg0, %c0_i32 : i32, i32
  }
  func.func @transform_1(%arg0: i32) -> (i32, i32) {
    %c0_i32 = arith.constant 0 : i32
    %c0_i32_0 = arith.constant 0 : i32
    %c0_i32_1 = arith.constant 0 : i32
    return %c0_i32, %c0_i32_0 : i32, i32
  }
  func.func @transform_2(%arg0: i32) -> (i32, i32) {
    %c0_i32 = arith.constant 0 : i32
    %c0_i32_0 = arith.constant 0 : i32
    %c0_i32_1 = arith.constant 0 : i32
    return %c0_i32, %c0_i32_0 : i32, i32
  }
  func.func @transform_3(%arg0: i32) -> (i32, i32) {
    %c0_i32 = arith.constant 0 : i32
    %c0_i32_0 = arith.constant 0 : i32
    return %arg0, %c0_i32 : i32, i32
  }
}

</mosaic_0001>

<llo_original>
// kernel: tpu_custom_call.1
$region0: #{tpu_custom_call.1}
  #allocation0 [shape = 'u32[]', space=smem, size = 0x4, offset = 0x4, fixed_abs, tag = 'smem constant byte address 0x4 - core index']
  #allocation1 [shape = 'u32[144,128]{1,0:T(1,128)}', space=vmem, size = 0x12000, scoped, tag = 'internal scratch']
  %s0 = inlined_call_operand.vmem [shape: f32[16,32], index: 0, kind: input, shape index: {}]
  %s1 = inlined_call_operand.vmem [shape: f32[32,8], index: 1, kind: input, shape index: {}]
  %s2 = inlined_call_operand.vmem [shape: f32[1,8], index: 2, kind: input, shape index: {}]
  %s3 = inlined_call_operand.vmem [shape: f32[16,8], index: 3, kind: output, shape index: {}]
  %s4 = sld [smem:[#allocation0]]
  $region22: #{tpu_custom_call.1} parent=0
    _
  %s6 = ssub.s32 1, %s4
  %s7 = scalar_select 0, %s6, %s4
  // Predicated region
  $region2: #{tpu_custom_call.1} parent=0 // pred_check
    _
  $region3: #{tpu_custom_call.1} parent=0 // pred_check_branch
    %9 = sbr.rel (0) target = $region5
  $region4: #{tpu_custom_call.1} parent=0 // pred_region
    _
  $region5: #{tpu_custom_call.1} parent=0 // pred_fallthru
    _
  // Predicated region
  $region6: #{tpu_custom_call.1} parent=0 // pred_check
    _
  $region7: #{tpu_custom_call.1} parent=0 // pred_check_branch
    %11 = sbr.rel (0) target = $region9
  $region8: #{tpu_custom_call.1} parent=0 // pred_region
    _
  $region9: #{tpu_custom_call.1} parent=0 // pred_fallthru
    _
  // Predicated region
  $region10: #{tpu_custom_call.1} parent=0 // pred_check
    _
  $region11: #{tpu_custom_call.1} parent=0 // pred_check_branch
    %13 = sbr.rel (0) target = $region13
  $region12: #{tpu_custom_call.1} parent=0 // pred_region
    _
  $region13: #{tpu_custom_call.1} parent=0 // pred_fallthru
    _
  %v14 = vld [vmem:[%s0] sm:$0xff]
  %v15 = vld [vmem:[%s0 + $0x8] sm:$0xff]
  %v16 = vmul.f32 %v14, %v14
  %v17 = vmul.f32 %v15, %v15
  %vm18 = vcmask 261120
  %v19 = vsel %vm18, %v16, 0.0
  %20 = vadd.xlane.f32.xlu0 %v19
  %v21 = vpop.xlane.xlu0 %20
  %v22 = vsel %vm18, %v17, 0.0
  %23 = vadd.xlane.f32.xlu0 %v22
  %v24 = vpop.xlane.xlu0 %23
  %v25 = vld [vmem:[%s1] sm:$0xff]
  %v26 = vld [vmem:[%s1 + $0x8] sm:$0xff]
  %v27 = vld [vmem:[%s1 + $0x10] sm:$0xff]
  %v28 = vld [vmem:[%s1 + $0x18] sm:$0xff]
  %v30 = vsel %vm18, %v14, 0
  %v33 = vsel %vm18, %v15, 0
  %35 = vmatprep.subr.mxu0 0.0
  %36 = vmatpush1.msra.mxu0 0.0
  %37 = vmatprep.subr.mxu0 0.0
  %38 = vmatpush1.msra.mxu0 0.0
  %39 = vmatprep.subr.mxu0 0.0
  %40 = vmatpush1.msra.mxu0 0.0
  %41 = vmatprep.subr.mxu0 0.0
  %42 = vmatpush1.msra.mxu0 0.0
  %43 = vmatprep.subr.mxu0 0.0
  %44 = vmatpush1.msra.mxu0 0.0
  %45 = vmatprep.subr.mxu0 0.0
  %46 = vmatpush1.msra.mxu0 0.0
  %47 = vmatprep.subr.mxu0 0.0
  %48 = vmatpush1.msra.mxu0 0.0
  %49 = vmatprep.subr.mxu0 0.0
  %50 = vmatpush1.msra.mxu0 0.0
  %51 = vmatprep.subr.mxu0 0.0
  %52 = vmatpush1.msra.mxu0 0.0
  %53 = vmatprep.subr.mxu0 0.0
  %54 = vmatpush1.msra.mxu0 0.0
  %55 = vmatprep.subr.mxu0 0.0
  %56 = vmatpush1.msra.mxu0 0.0
  %57 = vmatprep.subr.mxu0 0.0
  %58 = vmatpush1.msra.mxu0 0.0
  %59 = vmatprep.subr.mxu0 0.0
  %60 = vmatpush1.msra.mxu0 %v28
  %61 = vmatprep.subr.mxu0 0.0
  %62 = vmatpush1.msra.mxu0 %v27
  %63 = vmatprep.subr.mxu0 0.0
  %64 = vmatpush1.msra.mxu0 %v26
  %65 = vmatprep.subr.mxu0 0.0
  %66 = vmatpush1.msra.mxu0 %v25
  %67 = vmatprep.subr.mxu0 0.0
  %68 = vmatpush2.msra.mxu0 0.0
  %69 = vmatprep.subr.mxu0 0.0
  %70 = vmatpush2.msra.mxu0 0.0
  %71 = vmatprep.subr.mxu0 0.0
  %72 = vmatpush2.msra.mxu0 0.0
  %73 = vmatprep.subr.mxu0 0.0
  %74 = vmatpush2.msra.mxu0 0.0
  %75 = vmatprep.subr.mxu0 0.0
  %76 = vmatpush2.msra.mxu0 0.0
  %77 = vmatprep.subr.mxu0 0.0
  %78 = vmatpush2.msra.mxu0 0.0
  %79 = vmatprep.subr.mxu0 0.0
  %80 = vmatpush2.msra.mxu0 0.0
  %81 = vmatprep.subr.mxu0 0.0
  %82 = vmatpush2.msra.mxu0 0.0
  %83 = vmatprep.subr.mxu0 0.0
  %84 = vmatpush2.msra.mxu0 0.0
  %85 = vmatprep.subr.mxu0 0.0
  %86 = vmatpush2.msra.mxu0 0.0
  %87 = vmatprep.subr.mxu0 0.0
  %88 = vmatpush2.msra.mxu0 0.0
  %89 = vmatprep.subr.mxu0 0.0
  %90 = vmatpush2.msra.mxu0 0.0
  %91 = vmatprep.subr.mxu0 0.0
  %92 = vmatpush2.msra.mxu0 0.0
  %93 = vmatprep.subr.mxu0 0.0
  %94 = vmatpush2.msra.mxu0 0.0
  %95 = vmatprep.subr.mxu0 0.0
  %96 = vmatpush2.msra.mxu0 0.0
  %97 = vmatprep.subr.mxu0 0.0
  %98 = vmatpush2.msra.mxu0 0.0
  %99 = vmatprep.mubr.f32.mxu0 0.0
  %100 = vmatmul.mubr.f32.gmra.mxu0 %v30
  %v101 = vpop.f32.mrf.mxu0
  %v102 = vadd.f32 0.0, %v101
  %v103 = vpop.f32.mrf.mxu0
  %104 = vmatprep.mubr.f32.mxu0 0.0
  %105 = vmatmul.mubr.f32.gmra.mxu0 %v33
  %v106 = vpop.f32.mrf.mxu0
  %v107 = vadd.f32 0.0, %v106
  %v108 = vpop.f32.mrf.mxu0
  %109 = vdwg.mxu0
  %v110 = vld [vmem:[%s2] sm:$0x1]
  %v112 = vlaneseq
  %v113 = vshrl.u32 %v112, 7
  %v114 = vsub.s32 0, %v113
  %v115 = vrot.slane %v110, %v114
  %v117 = vadd.f32 %v21, %v115
  %v118 = vadd.f32 %v24, %v115
  %v119 = vmul.f32 %v102, 2.0
  %v120 = vmul.f32 %v107, 2.0
  %v121 = vsub.f32 %v117, %v119
  %v122 = vsub.f32 %v118, %v120
  %v123 = vmax.f32 %v121, 0.0
  %v124 = vmax.f32 %v122, 0.0
  %v125 = vrsqrt.pop %v123
  %v126 = vmul.f32 %v123, %v125
  %vm127 = vcmp.eq.f32.partialorder %v123, inf
  %v128 = vsel %vm127, %v123, %v126
  %vm129 = vcmp.eq.f32.partialorder %v123, 0.0
  %v130 = vand.u32 %v123, 2147483648
  %v131 = vsel %vm129, %v130, %v128
  %v132 = vrsqrt.pop %v124
  %v133 = vmul.f32 %v124, %v132
  %vm134 = vcmp.eq.f32.partialorder %v124, inf
  %v135 = vsel %vm134, %v124, %v133
  %vm136 = vcmp.eq.f32.partialorder %v124, 0.0
  %v137 = vand.u32 %v124, 2147483648
  %v138 = vsel %vm136, %v137, %v135
  %v139 = vsub.f32 0.0, %v131
  %v140 = vsub.f32 0.0, %v138
  %vm141 = vcmask 64512
  %v142 = vsel %vm141, %v139, -inf
  %143 = vmax.xlane.f32.xlu0 %v142
  %v144 = vpop.xlane.xlu0 %143
  %v145 = vsel %vm141, %v140, -inf
  %146 = vmax.xlane.f32.xlu0 %v145
  %v147 = vpop.xlane.xlu0 %146
  %v148 = vsub.f32 %v139, %v144
  %v149 = vsub.f32 %v140, %v147
  %v150 = vmul.f32 %v148, 1.442695
  %v151 = vpow.pop %v150
  %v152 = vmul.f32 %v149, 1.442695
  %v153 = vpow.pop %v152
  %v154 = vsel %vm141, %v151, 0.0
  %155 = vadd.xlane.f32.xlu0 %v154
  %v156 = vpop.xlane.xlu0 %155
  %v157 = vsel %vm141, %v153, 0.0
  %158 = vadd.xlane.f32.xlu0 %v157
  %v159 = vpop.xlane.xlu0 %158
  %v160 = vrcp.pop %v156
  %v161 = vmul.f32 %v151, %v160
  %v162 = vrcp.pop %v159
  %v163 = vmul.f32 %v153, %v162
  %164 = vst.msk [vmem:[%s3] sm:$0xff] %vm141, %v161
  %165 = vst.msk [vmem:[%s3 + $0x8] sm:$0xff] %vm141, %v163
  // Predicated region
  $region14: #{tpu_custom_call.1} parent=0 // pred_check
    _
  $region15: #{tpu_custom_call.1} parent=0 // pred_check_branch
    %167 = sbr.rel (0) target = $region17
  $region16: #{tpu_custom_call.1} parent=0 // pred_region
    _
  $region17: #{tpu_custom_call.1} parent=0 // pred_fallthru
    _
  // Predicated region
  $region18: #{tpu_custom_call.1} parent=0 // pred_check
    _
  $region19: #{tpu_custom_call.1} parent=0 // pred_check_branch
    %169 = sbr.rel (0) target = $region21
  $region20: #{tpu_custom_call.1} parent=0 // pred_region
    _
  $region21: #{tpu_custom_call.1} parent=0 // pred_fallthru
    _

</llo_original>
